<compile_context>
chip_gen: v6e
topology: v6e:2x2x1
jax: 0.10.0
libtpu: 0.0.40
codegen_flags: <defaults>
</compile_context>

<pallas_src>
import math
from functools import partial

import jax
import jax.numpy as jnp
from jax import lax
from jax.experimental import pallas as pl
from jax.experimental.pallas import tpu as pltpu

_EPS2 = 1e-16  # (1e-8)^2 : F.cosine_similarity clamps ||x||*||y|| at 1e-8


# ------------------ fused q/k/v projector: Linear -> ReLU -> Linear ------------------
def _qkv_projector_kernel(x_ref, wq1, wq2, wk1, wk2, wv1, wv2, q_ref, k_ref, v_ref):
    x = x_ref[...].astype(jnp.bfloat16)

    def proj(w1_ref, w2_ref, o_ref):
        h = jnp.dot(x, w1_ref[...].astype(jnp.bfloat16),
                    preferred_element_type=jnp.float32)
        h = jnp.maximum(h, 0.0)                                   # ReLU in f32
        y = jnp.dot(h.astype(jnp.bfloat16), w2_ref[...].astype(jnp.bfloat16),
                    preferred_element_type=jnp.float32)
        o_ref[...] = y.astype(o_ref.dtype)

    proj(wq1, wq2, q_ref)
    proj(wk1, wk2, k_ref)
    proj(wv1, wv2, v_ref)


def qkv_projector_pallas(x2d, params, *, tile_m=512, out_dtype=jnp.bfloat16):
    """x2d: (N, C) tokens -> (q, k, v), each (N, inner), in a single pallas_call."""
    n, c = x2d.shape
    inner = params['query'][1].shape[1]
    tm = min(tile_m, n)
    grid = (pl.cdiv(n, tm),)

    row_spec = pl.BlockSpec((tm, c), lambda i: (i, 0))
    w_specs = []
    for w1, w2 in (params['query'], params['key'], params['value']):
        w_specs.append(pl.BlockSpec(w1.shape, lambda i: (0, 0)))   # resident weights
        w_specs.append(pl.BlockSpec(w2.shape, lambda i: (0, 0)))
    out_spec = pl.BlockSpec((tm, inner), lambda i: (i, 0))

    q, k, v = pl.pallas_call(
        _qkv_projector_kernel,
        out_shape=[jax.ShapeDtypeStruct((n, inner), out_dtype)] * 3,
        grid_spec=pltpu.PrefetchScalarGridSpec(
            num_scalar_prefetch=0,
            grid=grid,
            in_specs=[row_spec] + w_specs,
            out_specs=[out_spec] * 3,
        ),
        compiler_params=pltpu.CompilerParams(dimension_semantics=("parallel",)),
    )(x2d, params['query'][0], params['query'][1],
      params['key'][0], params['key'][1],
      params['value'][0], params['value'][1])
    return q, k, v


# ---------- pairwise cross-attention + cosine-similarity kernel --------------
def _contrast_kernel(qa_ref, ka_ref, va_ref, qb_ref, kb_ref, vb_ref, out_ref,
                     *, scale, tok_tile):
    t = pl.program_id(1)
    ba, s, d = ka_ref.shape
    tc = tok_tile
    f32, bf16 = jnp.float32, jnp.bfloat16

    @pl.when(t == 0)
    def _init():
        out_ref[...] = jnp.zeros_like(out_ref)

    tok0 = pl.multiple_of(t * tc, tc)

    qa_c = qa_ref[...].reshape(ba * tc, d)                     # bf16 (Ba*Tc, D) a-query chunk
    ka_f = ka_ref[...].reshape(ba * s, d)                      # bf16 (Ba*S, D)  all a-keys
    va_f = va_ref[...]                                         # bf16 (Ba, S, D) all a-values
    va_c = va_ref[:, pl.ds(tok0, tc), :].reshape(ba * tc, d).astype(f32)
    qb_c = qb_ref[0]                                           # bf16 (Tc, D) b-query chunk
    kb_f = kb_ref[0]                                           # bf16 (S, D)  all b-keys
    vb_f = vb_ref[0]                                           # bf16 (S, D)  all b-values
    vb_c = vb_ref[0, pl.ds(tok0, tc), :].astype(f32)           # (Tc, D)

    # ---- a-queries (chunk) attend over all b-keys -> aligned_b; cos(v_a, aligned_b) ----
    s2 = lax.dot_general(qa_c, kb_f, (((1,), (1,)), ((), ())),
                         preferred_element_type=f32) * scale                 # (Ba*Tc, S)
    m2 = jnp.max(s2, axis=-1, keepdims=True)
    e2 = jnp.exp(s2 - m2)
    p2 = e2 * pl.reciprocal(jnp.sum(e2, axis=-1, keepdims=True), approx=True)
    aligned_b = jnp.dot(p2.astype(bf16), vb_f, preferred_element_type=f32)   # (Ba*Tc, D)

    num1 = jnp.sum(va_c * aligned_b, axis=-1, keepdims=True)
    nva2 = jnp.sum(va_c * va_c, axis=-1, keepdims=True)
    nab2 = jnp.sum(aligned_b * aligned_b, axis=-1, keepdims=True)
    cos1 = num1 * lax.rsqrt(jnp.maximum(nva2 * nab2, _EPS2))                 # (Ba*Tc, 1)
    sum1 = jnp.sum(cos1.reshape(ba, tc, 1), axis=1)                          # (Ba, 1)

    # ---- b-queries (chunk) attend over all a-keys -> aligned_a; cos(v_b, aligned_a) ----
    s1 = lax.dot_general(ka_f, qb_c, (((1,), (1,)), ((), ())),
                         preferred_element_type=f32) * scale                 # (Ba*S, Tc)
    s1 = s1.reshape(ba, s, tc)                                               # rows = a-keys
    m1 = jnp.max(s1, axis=1, keepdims=True)
    e1 = jnp.exp(s1 - m1)
    p1 = e1 * pl.reciprocal(jnp.sum(e1, axis=1, keepdims=True), approx=True)  # (Ba, S, Tc)
    # aligned_a[b, q, :] = sum_k p1[b, k, q] * va[b, k, :]
    aligned_a = lax.dot_general(p1.astype(bf16), va_f,
                                (((1,), (1,)), ((0,), (0,))),
                                preferred_element_type=f32)                  # (Ba, Tc, D)

    num2 = jnp.sum(vb_c[None, :, :] * aligned_a, axis=-1, keepdims=True)     # (Ba, Tc, 1)
    nvb2 = jnp.sum(vb_c * vb_c, axis=-1, keepdims=True)                      # (Tc, 1), once
    naa2 = jnp.sum(aligned_a * aligned_a, axis=-1, keepdims=True)
    cos2 = num2 * lax.rsqrt(jnp.maximum(nvb2[None, :, :] * naa2, _EPS2))     # (Ba, Tc, 1)
    sum2 = jnp.sum(cos2, axis=1)                                             # (Ba, 1)

    out_ref[0, :, :] += (sum1 + sum2) * (1.0 / s)                            # token mean


def contrast_pallas(qa, ka, va, qb, kb, vb, inner_size, *, token_tile=256):
    ba, s, d = qa.shape
    bb = qb.shape[0]
    tc = min(token_tile, s)
    if s % tc != 0:              # fall back to one chunk if the tile does not divide S
        tc = s
    grid = (bb, s // tc)
    scale = 1.0 / math.sqrt(inner_size)

    out = pl.pallas_call(
        partial(_contrast_kernel, scale=scale, tok_tile=tc),
        out_shape=jax.ShapeDtypeStruct((bb, ba, 1), jnp.float32),
        grid_spec=pltpu.PrefetchScalarGridSpec(
            num_scalar_prefetch=0,
            grid=grid,
            in_specs=[
                pl.BlockSpec((ba, tc, d), lambda i, t: (0, t, 0)),  # qa (token chunk)
                pl.BlockSpec((ba, s, d),  lambda i, t: (0, 0, 0)),  # ka (resident)
                pl.BlockSpec((ba, s, d),  lambda i, t: (0, 0, 0)),  # va (resident)
                pl.BlockSpec((1, tc, d),  lambda i, t: (i, t, 0)),  # qb (token chunk)
                pl.BlockSpec((1, s, d),   lambda i, t: (i, 0, 0)),  # kb
                pl.BlockSpec((1, s, d),   lambda i, t: (i, 0, 0)),  # vb
            ],
            out_specs=pl.BlockSpec((1, ba, 1), lambda i, t: (i, 0, 0)),
        ),
        compiler_params=pltpu.CompilerParams(
            dimension_semantics=("parallel", "arbitrary")),
    )(qa, ka, va, qb, kb, vb)
    return out[:, :, 0]                                         # (Bb, Ba), PyTorch layout


# ------------------- features_b=None self-alignment branch -------------------
def _self_align_kernel(q_ref, k_ref, v_ref, o_ref, *, scale):
    q = q_ref[0].astype(jnp.float32)                            # (S, D)
    k = k_ref[0].astype(jnp.float32)
    v = v_ref[0].astype(jnp.float32)
    sc = (q * k) * scale
    m = jnp.max(sc, axis=-1, keepdims=True)
    e = jnp.exp(sc - m)
    p = e * pl.reciprocal(jnp.sum(e, axis=-1, keepdims=True), approx=True)
    o_ref[0, :, :] = jnp.mean(p * v, axis=0, keepdims=True).astype(o_ref.dtype)


def self_align_pallas(q, k, v, inner_size):
    b, s, d = q.shape
    scale = 1.0 / math.sqrt(inner_size)
    out = pl.pallas_call(
        partial(_self_align_kernel, scale=scale),
        out_shape=jax.ShapeDtypeStruct((b, 1, d), jnp.float32),
        grid_spec=pltpu.PrefetchScalarGridSpec(
            num_scalar_prefetch=0,
            grid=(b,),
            in_specs=[pl.BlockSpec((1, s, d), lambda i: (i, 0, 0))] * 3,
            out_specs=pl.BlockSpec((1, 1, d), lambda i: (i, 0, 0)),
        ),
        compiler_params=pltpu.CompilerParams(dimension_semantics=("parallel",)),
    )(q, k, v)
    return out[:, 0, :]


# ------------------------------ module wrapper --------------------------------
def init_params(key, hidden, inner):
    ks = jax.random.split(key, 6)

    def lin(k, din, dout):
        return jax.random.normal(k, (din, dout), jnp.float32) / jnp.sqrt(jnp.float32(din))

    return {
        'query': (lin(ks[0], hidden, hidden), lin(ks[1], hidden, inner)),
        'key':   (lin(ks[2], hidden, hidden), lin(ks[3], hidden, inner)),
        'value': (lin(ks[4], hidden, hidden), lin(ks[5], hidden, inner)),
    }


def attention_similarity_forward(params, feats_a, feats_b, inner_size,
                                 *, proj_tile_m=512, token_tile=256):
    def tokens2d(f):                                            # NCHW -> (B*S, C)
        b, c, h, w = f.shape
        x = jnp.transpose(f.reshape(b, c, h * w), (0, 2, 1))
        return x.reshape(b * h * w, c), b, h * w

    xa2, b_a, s_a = tokens2d(feats_a)
    qa2, ka2, va2 = qkv_projector_pallas(xa2, params, tile_m=proj_tile_m)
    d = qa2.shape[-1]
    qa = qa2.reshape(b_a, s_a, d)
    ka = ka2.reshape(b_a, s_a, d)
    va = va2.reshape(b_a, s_a, d)

    if feats_b is None:
        return self_align_pallas(qa, ka, va, inner_size)

    xb2, b_b, s_b = tokens2d(feats_b)
    qb2, kb2, vb2 = qkv_projector_pallas(xb2, params, tile_m=proj_tile_m)
    qb = qb2.reshape(b_b, s_b, d)
    kb = kb2.reshape(b_b, s_b, d)
    vb = vb2.reshape(b_b, s_b, d)
    return contrast_pallas(qa, ka, va, qb, kb, vb, inner_size, token_tile=token_tile)


# ------------------------------ pure-JAX reference ----------------------------
def _reference_tokens(f):
    b, c, h, w = f.shape
    return jnp.transpose(f.reshape(b, c, h * w), (0, 2, 1))


def _reference_proj(x, w):
    return jnp.maximum(x @ w[0], 0.0) @ w[1]


def reference_forward(params, feats_a, feats_b, inner_size):
    xa = _reference_tokens(feats_a)
    qa = _reference_proj(xa, params['query'])
    ka = _reference_proj(xa, params['key'])
    va = _reference_proj(xa, params['value'])
    scale = 1.0 / math.sqrt(inner_size)

    if feats_b is None:
        p = jax.nn.softmax(qa * ka * scale, axis=-1)
        return jnp.mean(p * va, axis=1)

    xb = _reference_tokens(feats_b)
    qb = _reference_proj(xb, params['query'])
    kb = _reference_proj(xb, params['key'])
    vb = _reference_proj(xb, params['value'])

    s1 = jnp.einsum('isd,jtd->ijst', qb, ka) * scale            # (Bb, Ba, Sb, Sa)
    p1 = jax.nn.softmax(s1, axis=-1)
    aligned_a = jnp.einsum('ijst,jtd->ijsd', p1, va)

    s2 = jnp.einsum('jsd,itd->ijst', qa, kb) * scale            # (Bb, Ba, Sa, Sb)
    p2 = jax.nn.softmax(s2, axis=-1)
    aligned_b = jnp.einsum('ijst,itd->ijsd', p2, vb)

    eps = 1e-8

    def cos(x, y):
        num = jnp.sum(x * y, -1)
        den = jnp.linalg.norm(x, axis=-1) * jnp.linalg.norm(y, axis=-1)
        return num / jnp.maximum(den, eps)

    sim = cos(va[None], aligned_b) + cos(vb[:, None], aligned_a)   # (Bb, Ba, S)
    return sim.mean(-1)


if __name__ == "__main__":
    key = jax.random.PRNGKey(0)
    k_w, k_a, k_b = jax.random.split(key, 3)

    Ba, Bb, C, H, W = 2, 3, 32, 8, 8          # hidden_size = 32, S = H*W = 64
    inner = C // 8                            # inner_size = 4

    params = init_params(k_w, C, inner)
    feats_a = jax.random.normal(k_a, (Ba, C, H, W), jnp.float32)
    feats_b = jax.random.normal(k_b, (Bb, C, H, W), jnp.float32)

    # small tiles so the row-grid and token-chunk accumulation paths are exercised at toy sizes
    out = attention_similarity_forward(params, feats_a, feats_b, inner,
                                       proj_tile_m=64, token_tile=32)
    out = jax.block_until_ready(out)
    assert out.shape == (Bb, Ba), out.shape

    ref = reference_forward(params, feats_a, feats_b, inner)
    assert jnp.allclose(out, ref, atol=3e-2, rtol=3e-2), (out, ref)

    # features_b = None branch
    out_self = attention_similarity_forward(params, feats_a, None, inner,
                                            proj_tile_m=64)
    out_self = jax.block_until_ready(out_self)
    assert out_self.shape == (Ba, inner), out_self.shape
    ref_self = reference_forward(params, feats_a, None, inner)
    assert jnp.allclose(out_self, ref_self, atol=3e-2, rtol=3e-2), (out_self, ref_self)

    print("KERNEL_OK")
</pallas_src>

<mosaic_0001>
module attributes {stable_mosaic.version = 11 : i64} {
  func.func @_qkv_projector_kernel(%arg0: i32, %arg1: memref<64x32xf32, #tpu.memory_space<vmem>>, %arg2: memref<32x32xf32, #tpu.memory_space<vmem>>, %arg3: memref<32x4xf32, #tpu.memory_space<vmem>>, %arg4: memref<32x32xf32, #tpu.memory_space<vmem>>, %arg5: memref<32x4xf32, #tpu.memory_space<vmem>>, %arg6: memref<32x32xf32, #tpu.memory_space<vmem>>, %arg7: memref<32x4xf32, #tpu.memory_space<vmem>>, %arg8: memref<64x4xbf16, #tpu.memory_space<vmem>>, %arg9: memref<64x4xbf16, #tpu.memory_space<vmem>>, %arg10: memref<64x4xbf16, #tpu.memory_space<vmem>>) attributes {dimension_semantics = [#tpu.dimension_semantics<parallel>], iteration_bounds = array<i64: 2>, scalar_prefetch = 0 : i64, scratch_operands = 0 : i64, tpu.core_type = #tpu.core_type<tc>, window_params = [{transform_indices = @transform_0, window_bounds = array<i64: 64, 32>}, {pipeline_mode = #tpu.pipeline_mode<synchronous>, transform_indices = @transform_1, window_bounds = array<i64: 32, 32>}, {pipeline_mode = #tpu.pipeline_mode<synchronous>, transform_indices = @transform_2, window_bounds = array<i64: 32, 4>}, {pipeline_mode = #tpu.pipeline_mode<synchronous>, transform_indices = @transform_3, window_bounds = array<i64: 32, 32>}, {pipeline_mode = #tpu.pipeline_mode<synchronous>, transform_indices = @transform_4, window_bounds = array<i64: 32, 4>}, {pipeline_mode = #tpu.pipeline_mode<synchronous>, transform_indices = @transform_5, window_bounds = array<i64: 32, 32>}, {pipeline_mode = #tpu.pipeline_mode<synchronous>, transform_indices = @transform_6, window_bounds = array<i64: 32, 4>}, {transform_indices = @transform_7, window_bounds = array<i64: 64, 4>}, {transform_indices = @transform_8, window_bounds = array<i64: 64, 4>}, {transform_indices = @transform_9, window_bounds = array<i64: 64, 4>}]} {
    %c0 = arith.constant 0 : index
    %c0_0 = arith.constant 0 : index
    %0 = vector.load %arg1[%c0, %c0_0] : memref<64x32xf32, #tpu.memory_space<vmem>>, vector<64x32xf32>
    %1 = arith.truncf %0 : vector<64x32xf32> to vector<64x32xbf16>
    %c0_1 = arith.constant 0 : index
    %c0_2 = arith.constant 0 : index
    %2 = vector.load %arg2[%c0_1, %c0_2] : memref<32x32xf32, #tpu.memory_space<vmem>>, vector<32x32xf32>
    %3 = arith.truncf %2 : vector<32x32xf32> to vector<32x32xbf16>
    %cst = arith.constant dense<0.000000e+00> : vector<64x32xf32>
    %4 = tpu.matmul %1, %3, %cst {dimension_numbers = #tpu.dot_dimension_numbers<[1], [0], [0], [1], [0, 0, 1, 1], [], []>} : vector<64x32xbf16>, vector<32x32xbf16>, vector<64x32xf32> -> vector<64x32xf32>
    %cst_3 = arith.constant 0.000000e+00 : f32
    %5 = vector.broadcast %cst_3 : f32 to vector<64x32xf32>
    %6 = arith.maximumf %4, %5 : vector<64x32xf32>
    %7 = arith.truncf %6 : vector<64x32xf32> to vector<64x32xbf16>
    %c0_4 = arith.constant 0 : index
    %c0_5 = arith.constant 0 : index
    %8 = vector.load %arg3[%c0_4, %c0_5] : memref<32x4xf32, #tpu.memory_space<vmem>>, vector<32x4xf32>
    %9 = arith.truncf %8 : vector<32x4xf32> to vector<32x4xbf16>
    %cst_6 = arith.constant dense<0.000000e+00> : vector<64x4xf32>
    %10 = tpu.matmul %7, %9, %cst_6 {dimension_numbers = #tpu.dot_dimension_numbers<[1], [0], [0], [1], [0, 0, 1, 1], [], []>} : vector<64x32xbf16>, vector<32x4xbf16>, vector<64x4xf32> -> vector<64x4xf32>
    %11 = arith.truncf %10 : vector<64x4xf32> to vector<64x4xbf16>
    %c0_7 = arith.constant 0 : index
    %c0_8 = arith.constant 0 : index
    %12 = vector.load %arg8[%c0_7, %c0_8] : memref<64x4xbf16, #tpu.memory_space<vmem>>, vector<64x4xbf16>
    tpu.vector_store %arg8[%c0_7, %c0_8], %11 {strides = array<i32>} : memref<64x4xbf16, #tpu.memory_space<vmem>>, vector<64x4xbf16>,
    %c0_9 = arith.constant 0 : index
    %c0_10 = arith.constant 0 : index
    %13 = vector.load %arg4[%c0_9, %c0_10] : memref<32x32xf32, #tpu.memory_space<vmem>>, vector<32x32xf32>
    %14 = arith.truncf %13 : vector<32x32xf32> to vector<32x32xbf16>
    %cst_11 = arith.constant dense<0.000000e+00> : vector<64x32xf32>
    %15 = tpu.matmul %1, %14, %cst_11 {dimension_numbers = #tpu.dot_dimension_numbers<[1], [0], [0], [1], [0, 0, 1, 1], [], []>} : vector<64x32xbf16>, vector<32x32xbf16>, vector<64x32xf32> -> vector<64x32xf32>
    %cst_12 = arith.constant 0.000000e+00 : f32
    %16 = vector.broadcast %cst_12 : f32 to vector<64x32xf32>
    %17 = arith.maximumf %15, %16 : vector<64x32xf32>
    %18 = arith.truncf %17 : vector<64x32xf32> to vector<64x32xbf16>
    %c0_13 = arith.constant 0 : index
    %c0_14 = arith.constant 0 : index
    %19 = vector.load %arg5[%c0_13, %c0_14] : memref<32x4xf32, #tpu.memory_space<vmem>>, vector<32x4xf32>
    %20 = arith.truncf %19 : vector<32x4xf32> to vector<32x4xbf16>
    %cst_15 = arith.constant dense<0.000000e+00> : vector<64x4xf32>
    %21 = tpu.matmul %18, %20, %cst_15 {dimension_numbers = #tpu.dot_dimension_numbers<[1], [0], [0], [1], [0, 0, 1, 1], [], []>} : vector<64x32xbf16>, vector<32x4xbf16>, vector<64x4xf32> -> vector<64x4xf32>
    %22 = arith.truncf %21 : vector<64x4xf32> to vector<64x4xbf16>
    %c0_16 = arith.constant 0 : index
    %c0_17 = arith.constant 0 : index
    %23 = vector.load %arg9[%c0_16, %c0_17] : memref<64x4xbf16, #tpu.memory_space<vmem>>, vector<64x4xbf16>
    tpu.vector_store %arg9[%c0_16, %c0_17], %22 {strides = array<i32>} : memref<64x4xbf16, #tpu.memory_space<vmem>>, vector<64x4xbf16>,
    %c0_18 = arith.constant 0 : index
    %c0_19 = arith.constant 0 : index
    %24 = vector.load %arg6[%c0_18, %c0_19] : memref<32x32xf32, #tpu.memory_space<vmem>>, vector<32x32xf32>
    %25 = arith.truncf %24 : vector<32x32xf32> to vector<32x32xbf16>
    %cst_20 = arith.constant dense<0.000000e+00> : vector<64x32xf32>
    %26 = tpu.matmul %1, %25, %cst_20 {dimension_numbers = #tpu.dot_dimension_numbers<[1], [0], [0], [1], [0, 0, 1, 1], [], []>} : vector<64x32xbf16>, vector<32x32xbf16>, vector<64x32xf32> -> vector<64x32xf32>
    %cst_21 = arith.constant 0.000000e+00 : f32
    %27 = vector.broadcast %cst_21 : f32 to vector<64x32xf32>
    %28 = arith.maximumf %26, %27 : vector<64x32xf32>
    %29 = arith.truncf %28 : vector<64x32xf32> to vector<64x32xbf16>
    %c0_22 = arith.constant 0 : index
    %c0_23 = arith.constant 0 : index
    %30 = vector.load %arg7[%c0_22, %c0_23] : memref<32x4xf32, #tpu.memory_space<vmem>>, vector<32x4xf32>
    %31 = arith.truncf %30 : vector<32x4xf32> to vector<32x4xbf16>
    %cst_24 = arith.constant dense<0.000000e+00> : vector<64x4xf32>
    %32 = tpu.matmul %29, %31, %cst_24 {dimension_numbers = #tpu.dot_dimension_numbers<[1], [0], [0], [1], [0, 0, 1, 1], [], []>} : vector<64x32xbf16>, vector<32x4xbf16>, vector<64x4xf32> -> vector<64x4xf32>
    %33 = arith.truncf %32 : vector<64x4xf32> to vector<64x4xbf16>
    %c0_25 = arith.constant 0 : index
    %c0_26 = arith.constant 0 : index
    %34 = vector.load %arg10[%c0_25, %c0_26] : memref<64x4xbf16, #tpu.memory_space<vmem>>, vector<64x4xbf16>
    tpu.vector_store %arg10[%c0_25, %c0_26], %33 {strides = array<i32>} : memref<64x4xbf16, #tpu.memory_space<vmem>>, vector<64x4xbf16>,
    return
  }
  func.func @transform_0(%arg0: i32) -> (i32, i32) {
    %c0_i32 = arith.constant 0 : i32
    %c0_i32_0 = arith.constant 0 : i32
    return %arg0, %c0_i32 : i32, i32
  }
  func.func @transform_1(%arg0: i32) -> (i32, i32) {
    %c0_i32 = arith.constant 0 : i32
    %c0_i32_0 = arith.constant 0 : i32
    %c0_i32_1 = arith.constant 0 : i32
    return %c0_i32, %c0_i32_0 : i32, i32
  }
  func.func @transform_2(%arg0: i32) -> (i32, i32) {
    %c0_i32 = arith.constant 0 : i32
    %c0_i32_0 = arith.constant 0 : i32
    %c0_i32_1 = arith.constant 0 : i32
    return %c0_i32, %c0_i32_0 : i32, i32
  }
  func.func @transform_3(%arg0: i32) -> (i32, i32) {
    %c0_i32 = arith.constant 0 : i32
    %c0_i32_0 = arith.constant 0 : i32
    %c0_i32_1 = arith.constant 0 : i32
    return %c0_i32, %c0_i32_0 : i32, i32
  }
  func.func @transform_4(%arg0: i32) -> (i32, i32) {
    %c0_i32 = arith.constant 0 : i32
    %c0_i32_0 = arith.constant 0 : i32
    %c0_i32_1 = arith.constant 0 : i32
    return %c0_i32, %c0_i32_0 : i32, i32
  }
  func.func @transform_5(%arg0: i32) -> (i32, i32) {
    %c0_i32 = arith.constant 0 : i32
    %c0_i32_0 = arith.constant 0 : i32
    %c0_i32_1 = arith.constant 0 : i32
    return %c0_i32, %c0_i32_0 : i32, i32
  }
  func.func @transform_6(%arg0: i32) -> (i32, i32) {
    %c0_i32 = arith.constant 0 : i32
    %c0_i32_0 = arith.constant 0 : i32
    %c0_i32_1 = arith.constant 0 : i32
    return %c0_i32, %c0_i32_0 : i32, i32
  }
  func.func @transform_7(%arg0: i32) -> (i32, i32) {
    %c0_i32 = arith.constant 0 : i32
    %c0_i32_0 = arith.constant 0 : i32
    return %arg0, %c0_i32 : i32, i32
  }
  func.func @transform_8(%arg0: i32) -> (i32, i32) {
    %c0_i32 = arith.constant 0 : i32
    %c0_i32_0 = arith.constant 0 : i32
    return %arg0, %c0_i32 : i32, i32
  }
  func.func @transform_9(%arg0: i32) -> (i32, i32) {
    %c0_i32 = arith.constant 0 : i32
    %c0_i32_0 = arith.constant 0 : i32
    return %arg0, %c0_i32 : i32, i32
  }
}

</mosaic_0001>

<llo_original>
// kernel: tpu_custom_call.1
$region0: #{tpu_custom_call.1}
  #allocation0 [shape = 'u32[]', space=smem, size = 0x4, offset = 0x4, fixed_abs, tag = 'smem constant byte address 0x4 - core index']
  #allocation1 [shape = 'u32[144,128]{1,0:T(1,128)}', space=vmem, size = 0x12000, scoped, tag = 'internal scratch']
  %s0 = inlined_call_operand.vmem [shape: f32[128,32], index: 0, kind: input, shape index: {}]
  %s1 = inlined_call_operand.vmem [shape: f32[32,32], index: 1, kind: input, shape index: {}]
  %s2 = inlined_call_operand.vmem [shape: f32[32,4], index: 2, kind: input, shape index: {}]
  %s3 = inlined_call_operand.vmem [shape: f32[32,32], index: 3, kind: input, shape index: {}]
  %s4 = inlined_call_operand.vmem [shape: f32[32,4], index: 4, kind: input, shape index: {}]
  %s5 = inlined_call_operand.vmem [shape: f32[32,32], index: 5, kind: input, shape index: {}]
  %s6 = inlined_call_operand.vmem [shape: f32[32,4], index: 6, kind: input, shape index: {}]
  %s7 = inlined_call_operand.vmem [shape: bf16[128,4], index: 7, kind: output, shape index: {0}]
  %s8 = inlined_call_operand.vmem [shape: bf16[128,4], index: 8, kind: output, shape index: {1}]
  %s9 = inlined_call_operand.vmem [shape: bf16[128,4], index: 9, kind: output, shape index: {2}]
  %10 = xla_tuple %s7, %s8, %s9
  %s11 = sld [smem:[#allocation0]]
  $region77: #{tpu_custom_call.1} parent=0
    _
  %s13 = ssub.s32 1, %s11
  %s14 = scalar_select 0, %s13, %s11
  loop: start=0, step=1, limit=4
  $region2: #{tpu_custom_call.1} parent=0 // loop_pre_header
    _
  $region3: #{tpu_custom_call.1} parent=0 // loop_header
    %s16 = sphi 0, %s20
    %p17 = scmp.ge.s32.totalorder %s16, 4
    %s26 = sphi 0, %s28
    %s29 = sphi 0, %s26
    %s30 = sphi 0, %s29
    %s46 = sphi 0, %s30
    %s50 = sphi 0, %s50
    %s52 = sphi 0, %s50
    %s53 = sphi 0, %s52
    %s67 = sphi 0, %s53
    %s71 = sphi 0, %s71
    %s73 = sphi 0, %s71
    %s74 = sphi 0, %s73
    %s88 = sphi 0, %s74
    %s92 = sphi 0, %s92
    %s94 = sphi 0, %s92
    %s95 = sphi 0, %s94
    %s109 = sphi 0, %s95
    %s113 = sphi 0, %s113
    %s115 = sphi 0, %s113
    %s116 = sphi 0, %s115
    %s130 = sphi 0, %s116
    %s134 = sphi 0, %s134
    %s136 = sphi 0, %s134
    %s137 = sphi 0, %s136
    %s151 = sphi 0, %s137
    %s155 = sphi 0, %s155
    %s157 = sphi 0, %s155
    %s158 = sphi 0, %s157
    %s172 = sphi 0, %s158
    %s178 = sphi 0, %s180
    %s181 = sphi 0, %s178
    %s182 = sphi 0, %s181
    %s198 = sphi 0, %s182
    %s204 = sphi 0, %s206
    %s207 = sphi 0, %s204
    %s208 = sphi 0, %s207
    %s224 = sphi 0, %s208
    %s230 = sphi 0, %s232
    %s233 = sphi 0, %s230
    %s234 = sphi 0, %s233
    %s250 = sphi 0, %s234
  $region4: #{tpu_custom_call.1} parent=0 // loop_header_branch
    %19 = sbr.rel (%p17) target = $region8
  $region5: #{tpu_custom_call.1} parent=0 // loop_body
    %s21 = ssub.s32 %s16, 1
    %s22 = ssub.s32 %s16, 2
    %s23 = sadd.s32 %s16, 1
    %s24 = ssub.s32 %s16, %s23
    %p25 = scmp.eq.s32.totalorder %s24, 0
    %s27 = sadd.s32 %s26, 1
    %s28 = scalar_select %p25, %s26, %s27
    %p31 = pneg %p25
    %p32 = scmp.eq.s32.totalorder %s16, 1
    %p33 = por %p31, %p32
    %p34 = scmp.ne.s32.totalorder %s26, %s29
    %p35 = scmp.eq.s32.totalorder %s16, 0
    %p36 = por %p34, %p35
    %p37 = scmp.ne.s32.totalorder %s26, %s29
    %p38 = scmp.eq.s32.totalorder %s21, 1
    %p39 = por %p37, %p38
    %p40 = scmp.ne.s32.totalorder %s29, %s30
    %p41 = scmp.eq.s32.totalorder %s21, 0
    %p42 = por %p40, %p41
    %p43 = scmp.ne.s32.totalorder %s29, %s30
    %p44 = scmp.eq.s32.totalorder %s22, 1
    %p45 = por %p43, %p44
    %p47 = scmp.ne.s32.totalorder %s30, %s46
    %p48 = scmp.eq.s32.totalorder %s22, 0
    %p49 = por %p47, %p48
    %s51 = sadd.s32 %s50, 1
    %p54 = scmp.eq.s32.totalorder %s16, 1
    %p55 = scmp.ne.s32.totalorder %s50, %s52
    %p56 = scmp.eq.s32.totalorder %s16, 0
    %p57 = por %p55, %p56
    %p58 = scmp.ne.s32.totalorder %s50, %s52
    %p59 = scmp.eq.s32.totalorder %s21, 1
    %p60 = por %p58, %p59
    %p61 = scmp.ne.s32.totalorder %s52, %s53
    %p62 = scmp.eq.s32.totalorder %s21, 0
    %p63 = por %p61, %p62
    %p64 = scmp.ne.s32.totalorder %s52, %s53
    %p65 = scmp.eq.s32.totalorder %s22, 1
    %p66 = por %p64, %p65
    %p68 = scmp.ne.s32.totalorder %s53, %s67
    %p69 = scmp.eq.s32.totalorder %s22, 0
    %p70 = por %p68, %p69
    %s72 = sadd.s32 %s71, 1
    %p75 = scmp.eq.s32.totalorder %s16, 1
    %p76 = scmp.ne.s32.totalorder %s71, %s73
    %p77 = scmp.eq.s32.totalorder %s16, 0
    %p78 = por %p76, %p77
    %p79 = scmp.ne.s32.totalorder %s71, %s73
    %p80 = scmp.eq.s32.totalorder %s21, 1
    %p81 = por %p79, %p80
    %p82 = scmp.ne.s32.totalorder %s73, %s74
    %p83 = scmp.eq.s32.totalorder %s21, 0
    %p84 = por %p82, %p83
    %p85 = scmp.ne.s32.totalorder %s73, %s74
    %p86 = scmp.eq.s32.totalorder %s22, 1
    %p87 = por %p85, %p86
    %p89 = scmp.ne.s32.totalorder %s74, %s88
    %p90 = scmp.eq.s32.totalorder %s22, 0
    %p91 = por %p89, %p90
    %s93 = sadd.s32 %s92, 1
    %p96 = scmp.eq.s32.totalorder %s16, 1
    %p97 = scmp.ne.s32.totalorder %s92, %s94
    %p98 = scmp.eq.s32.totalorder %s16, 0
    %p99 = por %p97, %p98
    %p100 = scmp.ne.s32.totalorder %s92, %s94
    %p101 = scmp.eq.s32.totalorder %s21, 1
    %p102 = por %p100, %p101
    %p103 = scmp.ne.s32.totalorder %s94, %s95
    %p104 = scmp.eq.s32.totalorder %s21, 0
    %p105 = por %p103, %p104
    %p106 = scmp.ne.s32.totalorder %s94, %s95
    %p107 = scmp.eq.s32.totalorder %s22, 1
    %p108 = por %p106, %p107
    %p110 = scmp.ne.s32.totalorder %s95, %s109
    %p111 = scmp.eq.s32.totalorder %s22, 0
    %p112 = por %p110, %p111
    %s114 = sadd.s32 %s113, 1
    %p117 = scmp.eq.s32.totalorder %s16, 1
    %p118 = scmp.ne.s32.totalorder %s113, %s115
    %p119 = scmp.eq.s32.totalorder %s16, 0
    %p120 = por %p118, %p119
    %p121 = scmp.ne.s32.totalorder %s113, %s115
    %p122 = scmp.eq.s32.totalorder %s21, 1
    %p123 = por %p121, %p122
    %p124 = scmp.ne.s32.totalorder %s115, %s116
    %p125 = scmp.eq.s32.totalorder %s21, 0
    %p126 = por %p124, %p125
    %p127 = scmp.ne.s32.totalorder %s115, %s116
    %p128 = scmp.eq.s32.totalorder %s22, 1
    %p129 = por %p127, %p128
    %p131 = scmp.ne.s32.totalorder %s116, %s130
    %p132 = scmp.eq.s32.totalorder %s22, 0
    %p133 = por %p131, %p132
    %s135 = sadd.s32 %s134, 1
    %p138 = scmp.eq.s32.totalorder %s16, 1
    %p139 = scmp.ne.s32.totalorder %s134, %s136
    %p140 = scmp.eq.s32.totalorder %s16, 0
    %p141 = por %p139, %p140
    %p142 = scmp.ne.s32.totalorder %s134, %s136
    %p143 = scmp.eq.s32.totalorder %s21, 1
    %p144 = por %p142, %p143
    %p145 = scmp.ne.s32.totalorder %s136, %s137
    %p146 = scmp.eq.s32.totalorder %s21, 0
    %p147 = por %p145, %p146
    %p148 = scmp.ne.s32.totalorder %s136, %s137
    %p149 = scmp.eq.s32.totalorder %s22, 1
    %p150 = por %p148, %p149
    %p152 = scmp.ne.s32.totalorder %s137, %s151
    %p153 = scmp.eq.s32.totalorder %s22, 0
    %p154 = por %p152, %p153
    %s156 = sadd.s32 %s155, 1
    %p159 = scmp.eq.s32.totalorder %s16, 1
    %p160 = scmp.ne.s32.totalorder %s155, %s157
    %p161 = scmp.eq.s32.totalorder %s16, 0
    %p162 = por %p160, %p161
    %p163 = scmp.ne.s32.totalorder %s155, %s157
    %p164 = scmp.eq.s32.totalorder %s21, 1
    %p165 = por %p163, %p164
    %p166 = scmp.ne.s32.totalorder %s157, %s158
    %p167 = scmp.eq.s32.totalorder %s21, 0
    %p168 = por %p166, %p167
    %p169 = scmp.ne.s32.totalorder %s157, %s158
    %p170 = scmp.eq.s32.totalorder %s22, 1
    %p171 = por %p169, %p170
    %p173 = scmp.ne.s32.totalorder %s158, %s172
    %p174 = scmp.eq.s32.totalorder %s22, 0
    %p175 = por %p173, %p174
    %s176 = ssub.s32 %s16, %s23
    %p177 = scmp.eq.s32.totalorder %s176, 0
    %s179 = sadd.s32 %s178, 1
    %s180 = scalar_select %p177, %s178, %s179
    %p183 = pneg %p177
    %p184 = scmp.eq.s32.totalorder %s16, 1
    %p185 = por %p183, %p184
    %p186 = scmp.ne.s32.totalorder %s178, %s181
    %p187 = scmp.eq.s32.totalorder %s16, 0
    %p188 = por %p186, %p187
    %p189 = scmp.ne.s32.totalorder %s178, %s181
    %p190 = scmp.eq.s32.totalorder %s21, 1
    %p191 = por %p189, %p190
    %p192 = scmp.ne.s32.totalorder %s181, %s182
    %p193 = scmp.eq.s32.totalorder %s21, 0
    %p194 = por %p192, %p193
    %p195 = scmp.ne.s32.totalorder %s181, %s182
    %p196 = scmp.eq.s32.totalorder %s22, 1
    %p197 = por %p195, %p196
    %p199 = scmp.ne.s32.totalorder %s182, %s198
    %p200 = scmp.eq.s32.totalorder %s22, 0
    %p201 = por %p199, %p200
    %s202 = ssub.s32 %s16, %s23
    %p203 = scmp.eq.s32.totalorder %s202, 0
    %s205 = sadd.s32 %s204, 1
    %s206 = scalar_select %p203, %s204, %s205
    %p209 = pneg %p203
    %p210 = scmp.eq.s32.totalorder %s16, 1
    %p211 = por %p209, %p210
    %p212 = scmp.ne.s32.totalorder %s204, %s207
    %p213 = scmp.eq.s32.totalorder %s16, 0
    %p214 = por %p212, %p213
    %p215 = scmp.ne.s32.totalorder %s204, %s207
    %p216 = scmp.eq.s32.totalorder %s21, 1
    %p217 = por %p215, %p216
    %p218 = scmp.ne.s32.totalorder %s207, %s208
    %p219 = scmp.eq.s32.totalorder %s21, 0
    %p220 = por %p218, %p219
    %p221 = scmp.ne.s32.totalorder %s207, %s208
    %p222 = scmp.eq.s32.totalorder %s22, 1
    %p223 = por %p221, %p222
    %p225 = scmp.ne.s32.totalorder %s208, %s224
    %p226 = scmp.eq.s32.totalorder %s22, 0
    %p227 = por %p225, %p226
    %s228 = ssub.s32 %s16, %s23
    %p229 = scmp.eq.s32.totalorder %s228, 0
    %s231 = sadd.s32 %s230, 1
    %s232 = scalar_select %p229, %s230, %s231
    %p235 = pneg %p229
    %p236 = scmp.eq.s32.totalorder %s16, 1
    %p237 = por %p235, %p236
    %p238 = scmp.ne.s32.totalorder %s230, %s233
    %p239 = scmp.eq.s32.totalorder %s16, 0
    %p240 = por %p238, %p239
    %p241 = scmp.ne.s32.totalorder %s230, %s233
    %p242 = scmp.eq.s32.totalorder %s21, 1
    %p243 = por %p241, %p242
    %p244 = scmp.ne.s32.totalorder %s233, %s234
    %p245 = scmp.eq.s32.totalorder %s21, 0
    %p246 = por %p244, %p245
    %p247 = scmp.ne.s32.totalorder %s233, %s234
    %p248 = scmp.eq.s32.totalorder %s22, 1
    %p249 = por %p247, %p248
    %p251 = scmp.ne.s32.totalorder %s234, %s250
    %p252 = scmp.eq.s32.totalorder %s22, 0
    %p253 = por %p251, %p252
    %p254 = scmp.le.s32.totalorder 1, %s16
    %p255 = scmp.lt.s32.totalorder %s16, 3
    %p256 = pnand %p254, %p255
    %p257 = pneg %p256
    // Predicated region
    $region9: #{tpu_custom_call.1} parent=5 // pred_check
      _
    $region10: #{tpu_custom_call.1} parent=5 // pred_check_branch
      %259 = sbr.rel (%p256) target = $region12
    $region11: #{tpu_custom_call.1} parent=5 // pred_region
      %s260 = ssub.s32 %s16, 1
      // Predicated region
      $region13: #{tpu_custom_call.1} parent=11 // pred_check
        %p261 = pneg %p63
      $region14: #{tpu_custom_call.1} parent=11 // pred_check_branch
        %263 = sbr.rel (%p261) target = $region16
      $region15: #{tpu_custom_call.1} parent=11 // pred_region
        _
      $region16: #{tpu_custom_call.1} parent=11 // pred_fallthru
        _
      // Predicated region
      $region17: #{tpu_custom_call.1} parent=11 // pred_check
        %p264 = pneg %p84
      $region18: #{tpu_custom_call.1} parent=11 // pred_check_branch
        %266 = sbr.rel (%p264) target = $region20
      $region19: #{tpu_custom_call.1} parent=11 // pred_region
        _
      $region20: #{tpu_custom_call.1} parent=11 // pred_fallthru
        _
      // Predicated region
      $region21: #{tpu_custom_call.1} parent=11 // pred_check
        %p267 = pneg %p105
      $region22: #{tpu_custom_call.1} parent=11 // pred_check_branch
        %269 = sbr.rel (%p267) target = $region24
      $region23: #{tpu_custom_call.1} parent=11 // pred_region
        _
      $region24: #{tpu_custom_call.1} parent=11 // pred_fallthru
        _
      // Predicated region
      $region25: #{tpu_custom_call.1} parent=11 // pred_check
        %p270 = pneg %p126
      $region26: #{tpu_custom_call.1} parent=11 // pred_check_branch
        %272 = sbr.rel (%p270) target = $region28
      $region27: #{tpu_custom_call.1} parent=11 // pred_region
        _
      $region28: #{tpu_custom_call.1} parent=11 // pred_fallthru
        _
      // Predicated region
      $region29: #{tpu_custom_call.1} parent=11 // pred_check
        %p273 = pneg %p147
      $region30: #{tpu_custom_call.1} parent=11 // pred_check_branch
        %275 = sbr.rel (%p273) target = $region32
      $region31: #{tpu_custom_call.1} parent=11 // pred_region
        _
      $region32: #{tpu_custom_call.1} parent=11 // pred_fallthru
        _
      // Predicated region
      $region33: #{tpu_custom_call.1} parent=11 // pred_check
        %p276 = pneg %p168
      $region34: #{tpu_custom_call.1} parent=11 // pred_check_branch
        %278 = sbr.rel (%p276) target = $region36
      $region35: #{tpu_custom_call.1} parent=11 // pred_region
        _
      $region36: #{tpu_custom_call.1} parent=11 // pred_fallthru
        _
    $region12: #{tpu_custom_call.1} parent=5 // pred_fallthru
      _
    %p279 = scmp.lt.s32.totalorder %s16, 2
    // Predicated region
    $region37: #{tpu_custom_call.1} parent=5 // pred_check
      %p280 = pneg %p279
    $region38: #{tpu_custom_call.1} parent=5 // pred_check_branch
      %282 = sbr.rel (%p280) target = $region40
    $region39: #{tpu_custom_call.1} parent=5 // pred_region
      // Predicated region
      $region41: #{tpu_custom_call.1} parent=39 // pred_check
        %p283 = pneg %p36
      $region42: #{tpu_custom_call.1} parent=39 // pred_check_branch
        %285 = sbr.rel (%p283) target = $region44
      $region43: #{tpu_custom_call.1} parent=39 // pred_region
        %s286 = smul.u32 8, %s16
        %p287 = scmp.lt.s32.totalorder %s286, 15
        %s288 = scalar_select %p287, %s286, 15
        %s289 = smul.addr %s288, 8
        %s290 = scalar_lea.vmem %s0, %s289
        %s291 = smul.u32 8, %s16
      $region44: #{tpu_custom_call.1} parent=39 // pred_fallthru
        _
    $region40: #{tpu_custom_call.1} parent=5 // pred_fallthru
      _
    %p292 = scmp.le.s32.totalorder 1, %s16
    %p293 = scmp.lt.s32.totalorder %s16, 3
    %p294 = pnand %p292, %p293
    %p295 = pneg %p294
    // Predicated region
    $region45: #{tpu_custom_call.1} parent=5 // pred_check
      _
    $region46: #{tpu_custom_call.1} parent=5 // pred_check_branch
      %297 = sbr.rel (%p294) target = $region48
    $region47: #{tpu_custom_call.1} parent=5 // pred_region
      %s298 = ssub.s32 %s16, 1
      %s299 = smul.u32 8, %s21
      %p300 = scmp.lt.s32.totalorder %s299, 15
      %s301 = scalar_select %p300, %s299, 15
      %s302 = smul.addr %s301, 8
      %s303 = scalar_lea.vmem %s0, %s302
      %p304 = pneg %p42
      %p305 = pneg %p39
      %p306 = pneg %p63
      %p307 = pneg %p60
      %p308 = pneg %p84
      %p309 = pneg %p81
      %p310 = pneg %p105
      %p311 = pneg %p102
      %p312 = pneg %p126
      %p313 = pneg %p123
      %p314 = pneg %p147
      %p315 = pneg %p144
      %p316 = pneg %p168
      %p317 = pneg %p165
      %p318 = pneg %p194
      %p319 = pneg %p191
      %s320 = smul.u32 8, %s21
      %p321 = scmp.lt.s32.totalorder %s320, 15
      %s322 = scalar_select %p321, %s320, 15
      %s323 = smul.addr %s322, 4
      %s324 = scalar_lea.vmem %s7, %s323
      %p325 = pneg %p220
      %p326 = pneg %p217
      %s327 = smul.u32 8, %s21
      %p328 = scmp.lt.s32.totalorder %s327, 15
      %s329 = scalar_select %p328, %s327, 15
      %s330 = smul.addr %s329, 4
      %s331 = scalar_lea.vmem %s8, %s330
      %p332 = pneg %p246
      %p333 = pneg %p243
      %s334 = smul.u32 8, %s21
      %p335 = scmp.lt.s32.totalorder %s334, 15
      %s336 = scalar_select %p335, %s334, 15
      %s337 = smul.addr %s336, 4
      %s338 = scalar_lea.vmem %s9, %s337
      %s339 = smul.u32 8, %s21
      %p340 = scmp.lt.s32.totalorder %s339, 15
      %s341 = scalar_select %p340, %s339, 15
      %s342 = smul.addr %s341, 8
      %s343 = scalar_lea.vmem %s0, %s342
      %s344 = smul.u32 8, %s21
      %s345 = smul.u32 8, %s21
      %p346 = scmp.lt.s32.totalorder %s345, 15
      %s347 = scalar_select %p346, %s345, 15
      %s348 = smul.addr %s347, 4
      %s349 = scalar_lea.vmem %s7, %s348
      %s350 = smul.u32 8, %s21
      %s351 = smul.u32 8, %s21
      %p352 = scmp.lt.s32.totalorder %s351, 15
      %s353 = scalar_select %p352, %s351, 15
      %s354 = smul.addr %s353, 4
      %s355 = scalar_lea.vmem %s8, %s354
      %s356 = smul.u32 8, %s21
      %s357 = smul.u32 8, %s21
      %p358 = scmp.lt.s32.totalorder %s357, 15
      %s359 = scalar_select %p358, %s357, 15
      %s360 = smul.addr %s359, 4
      %s361 = scalar_lea.vmem %s9, %s360
      %s362 = smul.u32 8, %s21
      %v364 = vld [vmem:[%s343] sm:$0xff]
      %v365 = vld [vmem:[%s343 + $0x8] sm:$0xff]
      %v366 = vld [vmem:[%s343 + $0x10] sm:$0xff]
      %v367 = vld [vmem:[%s343 + $0x18] sm:$0xff]
      %v368 = vld [vmem:[%s343 + $0x20] sm:$0xff]
      %v369 = vld [vmem:[%s343 + $0x28] sm:$0xff]
      %v370 = vld [vmem:[%s343 + $0x30] sm:$0xff]
      %v371 = vld [vmem:[%s343 + $0x38] sm:$0xff]
      %v372 = vpack.c.bf16 %v365, %v364
      %v373 = vpack.c.bf16 %v367, %v366
      %v374 = vpack.c.bf16 %v369, %v368
      %v375 = vpack.c.bf16 %v371, %v370
      %v376 = vld [vmem:[%s1] sm:$0xff]
      %v377 = vld [vmem:[%s1 + $0x8] sm:$0xff]
      %v378 = vld [vmem:[%s1 + $0x10] sm:$0xff]
      %v379 = vld [vmem:[%s1 + $0x18] sm:$0xff]
      %v380 = vpack.c.bf16 %v377, %v376
      %v381 = vpack.c.bf16 %v379, %v378
      %vm382 = vcmask 261120
      %v384 = vsel %vm382, %v372, 0
      %v387 = vsel %vm382, %v373, 0
      %v390 = vsel %vm382, %v374, 0
      %v393 = vsel %vm382, %v375, 0
      %395 = vmatprep.subr.bf16.mxu0 0
      %396 = vmatpush1.bf16.msra.mxu0 0
      %397 = vmatprep.subr.bf16.mxu0 0
      %398 = vmatpush1.bf16.msra.mxu0 0
      %399 = vmatprep.subr.bf16.mxu0 0
      %400 = vmatpush1.bf16.msra.mxu0 0
      %401 = vmatprep.subr.bf16.mxu0 0
      %402 = vmatpush1.bf16.msra.mxu0 0
      %403 = vmatprep.subr.bf16.mxu0 0
      %404 = vmatpush1.bf16.msra.mxu0 0
      %405 = vmatprep.subr.bf16.mxu0 0
      %406 = vmatpush1.bf16.msra.mxu0 0
      %407 = vmatprep.subr.bf16.mxu0 0
      %408 = vmatpush1.bf16.msra.mxu0 %v381
      %409 = vmatprep.subr.bf16.mxu0 0
      %410 = vmatpush1.bf16.msra.mxu0 %v380
      %411 = vmatprep.subr.bf16.mxu0 0
      %412 = vmatpush2.bf16.msra.mxu0 0
      %413 = vmatprep.subr.bf16.mxu0 0
      %414 = vmatpush2.bf16.msra.mxu0 0
      %415 = vmatprep.subr.bf16.mxu0 0
      %416 = vmatpush2.bf16.msra.mxu0 0
      %417 = vmatprep.subr.bf16.mxu0 0
      %418 = vmatpush2.bf16.msra.mxu0 0
      %419 = vmatprep.subr.bf16.mxu0 0
      %420 = vmatpush2.bf16.msra.mxu0 0
      %421 = vmatprep.subr.bf16.mxu0 0
      %422 = vmatpush2.bf16.msra.mxu0 0
      %423 = vmatprep.subr.bf16.mxu0 0
      %424 = vmatpush2.bf16.msra.mxu0 0
      %425 = vmatprep.subr.bf16.mxu0 0
      %426 = vmatpush2.bf16.msra.mxu0 0
      %427 = vmatprep.mubr.bf16.mxu0 0
      %428 = vmatmul.mubr.bf16.gmra.mxu0 %v384
      %v429 = vpop.f32.mrf.mxu0
      %v430 = vadd.f32 0.0, %v429
      %v431 = vpop.f32.mrf.mxu0
      %v432 = vpop.f32.mrf.mxu0
      %v433 = vadd.f32 0.0, %v432
      %v434 = vpop.f32.mrf.mxu0
      %435 = vmatprep.mubr.bf16.mxu0 0
      %436 = vmatmul.mubr.bf16.gmra.mxu0 %v387
      %v437 = vpop.f32.mrf.mxu0
      %v438 = vadd.f32 0.0, %v437
      %v439 = vpop.f32.mrf.mxu0
      %v440 = vpop.f32.mrf.mxu0
      %v441 = vadd.f32 0.0, %v440
      %v442 = vpop.f32.mrf.mxu0
      %443 = vmatprep.mubr.bf16.mxu0 0
      %444 = vmatmul.mubr.bf16.gmra.mxu0 %v390
      %v445 = vpop.f32.mrf.mxu0
      %v446 = vadd.f32 0.0, %v445
      %v447 = vpop.f32.mrf.mxu0
      %v448 = vpop.f32.mrf.mxu0
      %v449 = vadd.f32 0.0, %v448
      %v450 = vpop.f32.mrf.mxu0
      %451 = vmatprep.mubr.bf16.mxu0 0
      %452 = vmatmul.mubr.bf16.gmra.mxu0 %v393
      %v453 = vpop.f32.mrf.mxu0
      %v454 = vadd.f32 0.0, %v453
      %v455 = vpop.f32.mrf.mxu0
      %v456 = vpop.f32.mrf.mxu0
      %v457 = vadd.f32 0.0, %v456
      %v458 = vpop.f32.mrf.mxu0
      %459 = vdwg.mxu0
      %v460 = vmax.f32 %v430, 0.0
      %v461 = vmax.f32 %v433, 0.0
      %v462 = vmax.f32 %v438, 0.0
      %v463 = vmax.f32 %v441, 0.0
      %v464 = vmax.f32 %v446, 0.0
      %v465 = vmax.f32 %v449, 0.0
      %v466 = vmax.f32 %v454, 0.0
      %v467 = vmax.f32 %v457, 0.0
      %v468 = vpack.c.bf16 %v461, %v460
      %v469 = vpack.c.bf16 %v463, %v462
      %v470 = vpack.c.bf16 %v465, %v464
      %v471 = vpack.c.bf16 %v467, %v466
      %v472 = vld [vmem:[%s2] sm:$0xff]
      %v473 = vld [vmem:[%s2 + $0x8] sm:$0xff]
      %v474 = vld [vmem:[%s2 + $0x10] sm:$0xff]
      %v475 = vld [vmem:[%s2 + $0x18] sm:$0xff]
      %v476 = vpack.c.bf16 %v473, %v472
      %v477 = vpack.c.bf16 %v475, %v474
      %v479 = vsel %vm382, %v468, 0
      %v482 = vsel %vm382, %v469, 0
      %v485 = vsel %vm382, %v470, 0
      %v488 = vsel %vm382, %v471, 0
      %490 = vmatprep.subr.bf16.mxu0 0
      %491 = vmatpush1.bf16.msra.mxu0 0
      %492 = vmatprep.subr.bf16.mxu0 0
      %493 = vmatpush1.bf16.msra.mxu0 0
      %494 = vmatprep.subr.bf16.mxu0 0
      %495 = vmatpush1.bf16.msra.mxu0 0
      %496 = vmatprep.subr.bf16.mxu0 0
      %497 = vmatpush1.bf16.msra.mxu0 0
      %498 = vmatprep.subr.bf16.mxu0 0
      %499 = vmatpush1.bf16.msra.mxu0 0
      %500 = vmatprep.subr.bf16.mxu0 0
      %501 = vmatpush1.bf16.msra.mxu0 0
      %502 = vmatprep.subr.bf16.mxu0 0
      %503 = vmatpush1.bf16.msra.mxu0 %v477
      %504 = vmatprep.subr.bf16.mxu0 0
      %505 = vmatpush1.bf16.msra.mxu0 %v476
      %506 = vmatprep.subr.bf16.mxu0 0
      %507 = vmatpush2.bf16.msra.mxu0 0
      %508 = vmatprep.subr.bf16.mxu0 0
      %509 = vmatpush2.bf16.msra.mxu0 0
      %510 = vmatprep.subr.bf16.mxu0 0
      %511 = vmatpush2.bf16.msra.mxu0 0
      %512 = vmatprep.subr.bf16.mxu0 0
      %513 = vmatpush2.bf16.msra.mxu0 0
      %514 = vmatprep.subr.bf16.mxu0 0
      %515 = vmatpush2.bf16.msra.mxu0 0
      %516 = vmatprep.subr.bf16.mxu0 0
      %517 = vmatpush2.bf16.msra.mxu0 0
      %518 = vmatprep.subr.bf16.mxu0 0
      %519 = vmatpush2.bf16.msra.mxu0 0
      %520 = vmatprep.subr.bf16.mxu0 0
      %521 = vmatpush2.bf16.msra.mxu0 0
      %522 = vmatprep.mubr.bf16.mxu0 0
      %523 = vmatmul.mubr.bf16.gmra.mxu0 %v479
      %v524 = vpop.f32.mrf.mxu0
      %v525 = vadd.f32 0.0, %v524
      %v526 = vpop.f32.mrf.mxu0
      %v527 = vpop.f32.mrf.mxu0
      %v528 = vadd.f32 0.0, %v527
      %v529 = vpop.f32.mrf.mxu0
      %530 = vmatprep.mubr.bf16.mxu0 0
      %531 = vmatmul.mubr.bf16.gmra.mxu0 %v482
      %v532 = vpop.f32.mrf.mxu0
      %v533 = vadd.f32 0.0, %v532
      %v534 = vpop.f32.mrf.mxu0
      %v535 = vpop.f32.mrf.mxu0
      %v536 = vadd.f32 0.0, %v535
      %v537 = vpop.f32.mrf.mxu0
      %538 = vmatprep.mubr.bf16.mxu0 0
      %539 = vmatmul.mubr.bf16.gmra.mxu0 %v485
      %v540 = vpop.f32.mrf.mxu0
      %v541 = vadd.f32 0.0, %v540
      %v542 = vpop.f32.mrf.mxu0
      %v543 = vpop.f32.mrf.mxu0
      %v544 = vadd.f32 0.0, %v543
      %v545 = vpop.f32.mrf.mxu0
      %546 = vmatprep.mubr.bf16.mxu0 0
      %547 = vmatmul.mubr.bf16.gmra.mxu0 %v488
      %v548 = vpop.f32.mrf.mxu0
      %v549 = vadd.f32 0.0, %v548
      %v550 = vpop.f32.mrf.mxu0
      %v551 = vpop.f32.mrf.mxu0
      %v552 = vadd.f32 0.0, %v551
      %v553 = vpop.f32.mrf.mxu0
      %554 = vdwg.mxu0
      %v555 = vpack.c.bf16 %v528, %v525
      %v556 = vpack.c.bf16 %v536, %v533
      %v557 = vpack.c.bf16 %v544, %v541
      %v558 = vpack.c.bf16 %v552, %v549
      %v563 = vunpack.c.l.b16 %v555
      %v564 = vunpack.c.h.b16 %v555
      %v565 = vunpack.c.l.b16 %v556
      %v566 = vunpack.c.h.b16 %v556
      %v567 = vunpack.c.l.b16 %v557
      %v568 = vunpack.c.h.b16 %v557
      %v569 = vunpack.c.l.b16 %v558
      %v570 = vunpack.c.h.b16 %v558
      %v571 = vpack.c.b16 %v563, %v563
      %v572 = vpack.c.b16 %v564, %v564
      %v573 = vpack.c.b16 %v565, %v565
      %v574 = vpack.c.b16 %v566, %v566
      %v575 = vpack.c.b16 %v567, %v567
      %v576 = vpack.c.b16 %v568, %v568
      %v577 = vpack.c.b16 %v569, %v569
      %v578 = vpack.c.b16 %v570, %v570
      %vm587 = vcmask 27648
      %588 = vst.msk [vmem:[%s349] sm:$0xf] %vm587, %v571
      %589 = vst.msk [vmem:[%s349 + $0x4] sm:$0xf] %vm587, %v572
      %590 = vst.msk [vmem:[%s349 + $0x8] sm:$0xf] %vm587, %v573
      %591 = vst.msk [vmem:[%s349 + $0xc] sm:$0xf] %vm587, %v574
      %592 = vst.msk [vmem:[%s349 + $0x10] sm:$0xf] %vm587, %v575
      %593 = vst.msk [vmem:[%s349 + $0x14] sm:$0xf] %vm587, %v576
      %594 = vst.msk [vmem:[%s349 + $0x18] sm:$0xf] %vm587, %v577
      %595 = vst.msk [vmem:[%s349 + $0x1c] sm:$0xf] %vm587, %v578
      %v596 = vld [vmem:[%s3] sm:$0xff]
      %v597 = vld [vmem:[%s3 + $0x8] sm:$0xff]
      %v598 = vld [vmem:[%s3 + $0x10] sm:$0xff]
      %v599 = vld [vmem:[%s3 + $0x18] sm:$0xff]
      %v600 = vpack.c.bf16 %v597, %v596
      %v601 = vpack.c.bf16 %v599, %v598
      %602 = vmatprep.subr.bf16.mxu0 0
      %603 = vmatpush1.bf16.msra.mxu0 0
      %604 = vmatprep.subr.bf16.mxu0 0
      %605 = vmatpush1.bf16.msra.mxu0 0
      %606 = vmatprep.subr.bf16.mxu0 0
      %607 = vmatpush1.bf16.msra.mxu0 0
      %608 = vmatprep.subr.bf16.mxu0 0
      %609 = vmatpush1.bf16.msra.mxu0 0
      %610 = vmatprep.subr.bf16.mxu0 0
      %611 = vmatpush1.bf16.msra.mxu0 0
      %612 = vmatprep.subr.bf16.mxu0 0
      %613 = vmatpush1.bf16.msra.mxu0 0
      %614 = vmatprep.subr.bf16.mxu0 0
      %615 = vmatpush1.bf16.msra.mxu0 %v601
      %616 = vmatprep.subr.bf16.mxu0 0
      %617 = vmatpush1.bf16.msra.mxu0 %v600
      %618 = vmatprep.subr.bf16.mxu0 0
      %619 = vmatpush2.bf16.msra.mxu0 0
      %620 = vmatprep.subr.bf16.mxu0 0
      %621 = vmatpush2.bf16.msra.mxu0 0
      %622 = vmatprep.subr.bf16.mxu0 0
      %623 = vmatpush2.bf16.msra.mxu0 0
      %624 = vmatprep.subr.bf16.mxu0 0
      %625 = vmatpush2.bf16.msra.mxu0 0
      %626 = vmatprep.subr.bf16.mxu0 0
      %627 = vmatpush2.bf16.msra.mxu0 0
      %628 = vmatprep.subr.bf16.mxu0 0
      %629 = vmatpush2.bf16.msra.mxu0 0
      %630 = vmatprep.subr.bf16.mxu0 0
      %631 = vmatpush2.bf16.msra.mxu0 0
      %632 = vmatprep.subr.bf16.mxu0 0
      %633 = vmatpush2.bf16.msra.mxu0 0
      %634 = vmatprep.mubr.bf16.mxu0 0
      %635 = vmatmul.mubr.bf16.gmra.mxu0 %v384
      %v636 = vpop.f32.mrf.mxu0
      %v637 = vadd.f32 0.0, %v636
      %v638 = vpop.f32.mrf.mxu0
      %v639 = vpop.f32.mrf.mxu0
      %v640 = vadd.f32 0.0, %v639
      %v641 = vpop.f32.mrf.mxu0
      %642 = vmatprep.mubr.bf16.mxu0 0
      %643 = vmatmul.mubr.bf16.gmra.mxu0 %v387
      %v644 = vpop.f32.mrf.mxu0
      %v645 = vadd.f32 0.0, %v644
      %v646 = vpop.f32.mrf.mxu0
      %v647 = vpop.f32.mrf.mxu0
      %v648 = vadd.f32 0.0, %v647
      %v649 = vpop.f32.mrf.mxu0
      %650 = vmatprep.mubr.bf16.mxu0 0
      %651 = vmatmul.mubr.bf16.gmra.mxu0 %v390
      %v652 = vpop.f32.mrf.mxu0
      %v653 = vadd.f32 0.0, %v652
      %v654 = vpop.f32.mrf.mxu0
      %v655 = vpop.f32.mrf.mxu0
      %v656 = vadd.f32 0.0, %v655
      %v657 = vpop.f32.mrf.mxu0
      %658 = vmatprep.mubr.bf16.mxu0 0
      %659 = vmatmul.mubr.bf16.gmra.mxu0 %v393
      %v660 = vpop.f32.mrf.mxu0
      %v661 = vadd.f32 0.0, %v660
      %v662 = vpop.f32.mrf.mxu0
      %v663 = vpop.f32.mrf.mxu0
      %v664 = vadd.f32 0.0, %v663
      %v665 = vpop.f32.mrf.mxu0
      %666 = vdwg.mxu0
      %v667 = vmax.f32 %v637, 0.0
      %v668 = vmax.f32 %v640, 0.0
      %v669 = vmax.f32 %v645, 0.0
      %v670 = vmax.f32 %v648, 0.0
      %v671 = vmax.f32 %v653, 0.0
      %v672 = vmax.f32 %v656, 0.0
      %v673 = vmax.f32 %v661, 0.0
      %v674 = vmax.f32 %v664, 0.0
      %v675 = vpack.c.bf16 %v668, %v667
      %v676 = vpack.c.bf16 %v670, %v669
      %v677 = vpack.c.bf16 %v672, %v671
      %v678 = vpack.c.bf16 %v674, %v673
      %v679 = vld [vmem:[%s4] sm:$0xff]
      %v680 = vld [vmem:[%s4 + $0x8] sm:$0xff]
      %v681 = vld [vmem:[%s4 + $0x10] sm:$0xff]
      %v682 = vld [vmem:[%s4 + $0x18] sm:$0xff]
      %v683 = vpack.c.bf16 %v680, %v679
      %v684 = vpack.c.bf16 %v682, %v681
      %v686 = vsel %vm382, %v675, 0
      %v689 = vsel %vm382, %v676, 0
      %v692 = vsel %vm382, %v677, 0
      %v695 = vsel %vm382, %v678, 0
      %697 = vmatprep.subr.bf16.mxu0 0
      %698 = vmatpush1.bf16.msra.mxu0 0
      %699 = vmatprep.subr.bf16.mxu0 0
      %700 = vmatpush1.bf16.msra.mxu0 0
      %701 = vmatprep.subr.bf16.mxu0 0
      %702 = vmatpush1.bf16.msra.mxu0 0
      %703 = vmatprep.subr.bf16.mxu0 0
      %704 = vmatpush1.bf16.msra.mxu0 0
      %705 = vmatprep.subr.bf16.mxu0 0
      %706 = vmatpush1.bf16.msra.mxu0 0
      %707 = vmatprep.subr.bf16.mxu0 0
      %708 = vmatpush1.bf16.msra.mxu0 0
      %709 = vmatprep.subr.bf16.mxu0 0
      %710 = vmatpush1.bf16.msra.mxu0 %v684
      %711 = vmatprep.subr.bf16.mxu0 0
      %712 = vmatpush1.bf16.msra.mxu0 %v683
      %713 = vmatprep.subr.bf16.mxu0 0
      %714 = vmatpush2.bf16.msra.mxu0 0
      %715 = vmatprep.subr.bf16.mxu0 0
      %716 = vmatpush2.bf16.msra.mxu0 0
      %717 = vmatprep.subr.bf16.mxu0 0
      %718 = vmatpush2.bf16.msra.mxu0 0
      %719 = vmatprep.subr.bf16.mxu0 0
      %720 = vmatpush2.bf16.msra.mxu0 0
      %721 = vmatprep.subr.bf16.mxu0 0
      %722 = vmatpush2.bf16.msra.mxu0 0
      %723 = vmatprep.subr.bf16.mxu0 0
      %724 = vmatpush2.bf16.msra.mxu0 0
      %725 = vmatprep.subr.bf16.mxu0 0
      %726 = vmatpush2.bf16.msra.mxu0 0
      %727 = vmatprep.subr.bf16.mxu0 0
      %728 = vmatpush2.bf16.msra.mxu0 0
      %729 = vmatprep.mubr.bf16.mxu0 0
      %730 = vmatmul.mubr.bf16.gmra.mxu0 %v686
      %v731 = vpop.f32.mrf.mxu0
      %v732 = vadd.f32 0.0, %v731
      %v733 = vpop.f32.mrf.mxu0
      %v734 = vpop.f32.mrf.mxu0
      %v735 = vadd.f32 0.0, %v734
      %v736 = vpop.f32.mrf.mxu0
      %737 = vmatprep.mubr.bf16.mxu0 0
      %738 = vmatmul.mubr.bf16.gmra.mxu0 %v689
      %v739 = vpop.f32.mrf.mxu0
      %v740 = vadd.f32 0.0, %v739
      %v741 = vpop.f32.mrf.mxu0
      %v742 = vpop.f32.mrf.mxu0
      %v743 = vadd.f32 0.0, %v742
      %v744 = vpop.f32.mrf.mxu0
      %745 = vmatprep.mubr.bf16.mxu0 0
      %746 = vmatmul.mubr.bf16.gmra.mxu0 %v692
      %v747 = vpop.f32.mrf.mxu0
      %v748 = vadd.f32 0.0, %v747
      %v749 = vpop.f32.mrf.mxu0
      %v750 = vpop.f32.mrf.mxu0
      %v751 = vadd.f32 0.0, %v750
      %v752 = vpop.f32.mrf.mxu0
      %753 = vmatprep.mubr.bf16.mxu0 0
      %754 = vmatmul.mubr.bf16.gmra.mxu0 %v695
      %v755 = vpop.f32.mrf.mxu0
      %v756 = vadd.f32 0.0, %v755
      %v757 = vpop.f32.mrf.mxu0
      %v758 = vpop.f32.mrf.mxu0
      %v759 = vadd.f32 0.0, %v758
      %v760 = vpop.f32.mrf.mxu0
      %761 = vdwg.mxu0
      %v762 = vpack.c.bf16 %v735, %v732
      %v763 = vpack.c.bf16 %v743, %v740
      %v764 = vpack.c.bf16 %v751, %v748
      %v765 = vpack.c.bf16 %v759, %v756
      %v770 = vunpack.c.l.b16 %v762
      %v771 = vunpack.c.h.b16 %v762
      %v772 = vunpack.c.l.b16 %v763
      %v773 = vunpack.c.h.b16 %v763
      %v774 = vunpack.c.l.b16 %v764
      %v775 = vunpack.c.h.b16 %v764
      %v776 = vunpack.c.l.b16 %v765
      %v777 = vunpack.c.h.b16 %v765
      %v778 = vpack.c.b16 %v770, %v770
      %v779 = vpack.c.b16 %v771, %v771
      %v780 = vpack.c.b16 %v772, %v772
      %v781 = vpack.c.b16 %v773, %v773
      %v782 = vpack.c.b16 %v774, %v774
      %v783 = vpack.c.b16 %v775, %v775
      %v784 = vpack.c.b16 %v776, %v776
      %v785 = vpack.c.b16 %v777, %v777
      %794 = vst.msk [vmem:[%s355] sm:$0xf] %vm587, %v778
      %795 = vst.msk [vmem:[%s355 + $0x4] sm:$0xf] %vm587, %v779
      %796 = vst.msk [vmem:[%s355 + $0x8] sm:$0xf] %vm587, %v780
      %797 = vst.msk [vmem:[%s355 + $0xc] sm:$0xf] %vm587, %v781
      %798 = vst.msk [vmem:[%s355 + $0x10] sm:$0xf] %vm587, %v782
      %799 = vst.msk [vmem:[%s355 + $0x14] sm:$0xf] %vm587, %v783
      %800 = vst.msk [vmem:[%s355 + $0x18] sm:$0xf] %vm587, %v784
      %801 = vst.msk [vmem:[%s355 + $0x1c] sm:$0xf] %vm587, %v785
      %v802 = vld [vmem:[%s5] sm:$0xff]
      %v803 = vld [vmem:[%s5 + $0x8] sm:$0xff]
      %v804 = vld [vmem:[%s5 + $0x10] sm:$0xff]
      %v805 = vld [vmem:[%s5 + $0x18] sm:$0xff]
      %v806 = vpack.c.bf16 %v803, %v802
      %v807 = vpack.c.bf16 %v805, %v804
      %808 = vmatprep.subr.bf16.mxu0 0
      %809 = vmatpush1.bf16.msra.mxu0 0
      %810 = vmatprep.subr.bf16.mxu0 0
      %811 = vmatpush1.bf16.msra.mxu0 0
      %812 = vmatprep.subr.bf16.mxu0 0
      %813 = vmatpush1.bf16.msra.mxu0 0
      %814 = vmatprep.subr.bf16.mxu0 0
      %815 = vmatpush1.bf16.msra.mxu0 0
      %816 = vmatprep.subr.bf16.mxu0 0
      %817 = vmatpush1.bf16.msra.mxu0 0
      %818 = vmatprep.subr.bf16.mxu0 0
      %819 = vmatpush1.bf16.msra.mxu0 0
      %820 = vmatprep.subr.bf16.mxu0 0
      %821 = vmatpush1.bf16.msra.mxu0 %v807
      %822 = vmatprep.subr.bf16.mxu0 0
      %823 = vmatpush1.bf16.msra.mxu0 %v806
      %824 = vmatprep.subr.bf16.mxu0 0
      %825 = vmatpush2.bf16.msra.mxu0 0
      %826 = vmatprep.subr.bf16.mxu0 0
      %827 = vmatpush2.bf16.msra.mxu0 0
      %828 = vmatprep.subr.bf16.mxu0 0
      %829 = vmatpush2.bf16.msra.mxu0 0
      %830 = vmatprep.subr.bf16.mxu0 0
      %831 = vmatpush2.bf16.msra.mxu0 0
      %832 = vmatprep.subr.bf16.mxu0 0
      %833 = vmatpush2.bf16.msra.mxu0 0
      %834 = vmatprep.subr.bf16.mxu0 0
      %835 = vmatpush2.bf16.msra.mxu0 0
      %836 = vmatprep.subr.bf16.mxu0 0
      %837 = vmatpush2.bf16.msra.mxu0 0
      %838 = vmatprep.subr.bf16.mxu0 0
      %839 = vmatpush2.bf16.msra.mxu0 0
      %840 = vmatprep.mubr.bf16.mxu0 0
      %841 = vmatmul.mubr.bf16.gmra.mxu0 %v384
      %v842 = vpop.f32.mrf.mxu0
      %v843 = vadd.f32 0.0, %v842
      %v844 = vpop.f32.mrf.mxu0
      %v845 = vpop.f32.mrf.mxu0
      %v846 = vadd.f32 0.0, %v845
      %v847 = vpop.f32.mrf.mxu0
      %848 = vmatprep.mubr.bf16.mxu0 0
      %849 = vmatmul.mubr.bf16.gmra.mxu0 %v387
      %v850 = vpop.f32.mrf.mxu0
      %v851 = vadd.f32 0.0, %v850
      %v852 = vpop.f32.mrf.mxu0
      %v853 = vpop.f32.mrf.mxu0
      %v854 = vadd.f32 0.0, %v853
      %v855 = vpop.f32.mrf.mxu0
      %856 = vmatprep.mubr.bf16.mxu0 0
      %857 = vmatmul.mubr.bf16.gmra.mxu0 %v390
      %v858 = vpop.f32.mrf.mxu0
      %v859 = vadd.f32 0.0, %v858
      %v860 = vpop.f32.mrf.mxu0
      %v861 = vpop.f32.mrf.mxu0
      %v862 = vadd.f32 0.0, %v861
      %v863 = vpop.f32.mrf.mxu0
      %864 = vmatprep.mubr.bf16.mxu0 0
      %865 = vmatmul.mubr.bf16.gmra.mxu0 %v393
      %v866 = vpop.f32.mrf.mxu0
      %v867 = vadd.f32 0.0, %v866
      %v868 = vpop.f32.mrf.mxu0
      %v869 = vpop.f32.mrf.mxu0
      %v870 = vadd.f32 0.0, %v869
      %v871 = vpop.f32.mrf.mxu0
      %872 = vdwg.mxu0
      %v873 = vmax.f32 %v843, 0.0
      %v874 = vmax.f32 %v846, 0.0
      %v875 = vmax.f32 %v851, 0.0
      %v876 = vmax.f32 %v854, 0.0
      %v877 = vmax.f32 %v859, 0.0
      %v878 = vmax.f32 %v862, 0.0
      %v879 = vmax.f32 %v867, 0.0
      %v880 = vmax.f32 %v870, 0.0
      %v881 = vpack.c.bf16 %v874, %v873
      %v882 = vpack.c.bf16 %v876, %v875
      %v883 = vpack.c.bf16 %v878, %v877
      %v884 = vpack.c.bf16 %v880, %v879
      %v885 = vld [vmem:[%s6] sm:$0xff]
      %v886 = vld [vmem:[%s6 + $0x8] sm:$0xff]
      %v887 = vld [vmem:[%s6 + $0x10] sm:$0xff]
      %v888 = vld [vmem:[%s6 + $0x18] sm:$0xff]
      %v889 = vpack.c.bf16 %v886, %v885
      %v890 = vpack.c.bf16 %v888, %v887
      %v892 = vsel %vm382, %v881, 0
      %v895 = vsel %vm382, %v882, 0
      %v898 = vsel %vm382, %v883, 0
      %v901 = vsel %vm382, %v884, 0
      %903 = vmatprep.subr.bf16.mxu0 0
      %904 = vmatpush1.bf16.msra.mxu0 0
      %905 = vmatprep.subr.bf16.mxu0 0
      %906 = vmatpush1.bf16.msra.mxu0 0
      %907 = vmatprep.subr.bf16.mxu0 0
      %908 = vmatpush1.bf16.msra.mxu0 0
      %909 = vmatprep.subr.bf16.mxu0 0
      %910 = vmatpush1.bf16.msra.mxu0 0
      %911 = vmatprep.subr.bf16.mxu0 0
      %912 = vmatpush1.bf16.msra.mxu0 0
      %913 = vmatprep.subr.bf16.mxu0 0
      %914 = vmatpush1.bf16.msra.mxu0 0
      %915 = vmatprep.subr.bf16.mxu0 0
      %916 = vmatpush1.bf16.msra.mxu0 %v890
      %917 = vmatprep.subr.bf16.mxu0 0
      %918 = vmatpush1.bf16.msra.mxu0 %v889
      %919 = vmatprep.subr.bf16.mxu0 0
      %920 = vmatpush2.bf16.msra.mxu0 0
      %921 = vmatprep.subr.bf16.mxu0 0
      %922 = vmatpush2.bf16.msra.mxu0 0
      %923 = vmatprep.subr.bf16.mxu0 0
      %924 = vmatpush2.bf16.msra.mxu0 0
      %925 = vmatprep.subr.bf16.mxu0 0
      %926 = vmatpush2.bf16.msra.mxu0 0
      %927 = vmatprep.subr.bf16.mxu0 0
      %928 = vmatpush2.bf16.msra.mxu0 0
      %929 = vmatprep.subr.bf16.mxu0 0
      %930 = vmatpush2.bf16.msra.mxu0 0
      %931 = vmatprep.subr.bf16.mxu0 0
      %932 = vmatpush2.bf16.msra.mxu0 0
      %933 = vmatprep.subr.bf16.mxu0 0
      %934 = vmatpush2.bf16.msra.mxu0 0
      %935 = vmatprep.mubr.bf16.mxu0 0
      %936 = vmatmul.mubr.bf16.gmra.mxu0 %v892
      %v937 = vpop.f32.mrf.mxu0
      %v938 = vadd.f32 0.0, %v937
      %v939 = vpop.f32.mrf.mxu0
      %v940 = vpop.f32.mrf.mxu0
      %v941 = vadd.f32 0.0, %v940
      %v942 = vpop.f32.mrf.mxu0
      %943 = vmatprep.mubr.bf16.mxu0 0
      %944 = vmatmul.mubr.bf16.gmra.mxu0 %v895
      %v945 = vpop.f32.mrf.mxu0
      %v946 = vadd.f32 0.0, %v945
      %v947 = vpop.f32.mrf.mxu0
      %v948 = vpop.f32.mrf.mxu0
      %v949 = vadd.f32 0.0, %v948
      %v950 = vpop.f32.mrf.mxu0
      %951 = vmatprep.mubr.bf16.mxu0 0
      %952 = vmatmul.mubr.bf16.gmra.mxu0 %v898
      %v953 = vpop.f32.mrf.mxu0
      %v954 = vadd.f32 0.0, %v953
      %v955 = vpop.f32.mrf.mxu0
      %v956 = vpop.f32.mrf.mxu0
      %v957 = vadd.f32 0.0, %v956
      %v958 = vpop.f32.mrf.mxu0
      %959 = vmatprep.mubr.bf16.mxu0 0
      %960 = vmatmul.mubr.bf16.gmra.mxu0 %v901
      %v961 = vpop.f32.mrf.mxu0
      %v962 = vadd.f32 0.0, %v961
      %v963 = vpop.f32.mrf.mxu0
      %v964 = vpop.f32.mrf.mxu0
      %v965 = vadd.f32 0.0, %v964
      %v966 = vpop.f32.mrf.mxu0
      %967 = vdwg.mxu0
      %v968 = vpack.c.bf16 %v941, %v938
      %v969 = vpack.c.bf16 %v949, %v946
      %v970 = vpack.c.bf16 %v957, %v954
      %v971 = vpack.c.bf16 %v965, %v962
      %v976 = vunpack.c.l.b16 %v968
      %v977 = vunpack.c.h.b16 %v968
      %v978 = vunpack.c.l.b16 %v969
      %v979 = vunpack.c.h.b16 %v969
      %v980 = vunpack.c.l.b16 %v970
      %v981 = vunpack.c.h.b16 %v970
      %v982 = vunpack.c.l.b16 %v971
      %v983 = vunpack.c.h.b16 %v971
      %v984 = vpack.c.b16 %v976, %v976
      %v985 = vpack.c.b16 %v977, %v977
      %v986 = vpack.c.b16 %v978, %v978
      %v987 = vpack.c.b16 %v979, %v979
      %v988 = vpack.c.b16 %v980, %v980
      %v989 = vpack.c.b16 %v981, %v981
      %v990 = vpack.c.b16 %v982, %v982
      %v991 = vpack.c.b16 %v983, %v983
      %1000 = vst.msk [vmem:[%s361] sm:$0xf] %vm587, %v984
      %1001 = vst.msk [vmem:[%s361 + $0x4] sm:$0xf] %vm587, %v985
      %1002 = vst.msk [vmem:[%s361 + $0x8] sm:$0xf] %vm587, %v986
      %1003 = vst.msk [vmem:[%s361 + $0xc] sm:$0xf] %vm587, %v987
      %1004 = vst.msk [vmem:[%s361 + $0x10] sm:$0xf] %vm587, %v988
      %1005 = vst.msk [vmem:[%s361 + $0x14] sm:$0xf] %vm587, %v989
      %1006 = vst.msk [vmem:[%s361 + $0x18] sm:$0xf] %vm587, %v990
      %1007 = vst.msk [vmem:[%s361 + $0x1c] sm:$0xf] %vm587, %v991
      %s1008 = smul.u32 8, %s21
      %p1009 = scmp.lt.s32.totalorder %s1008, 15
      %s1010 = scalar_select %p1009, %s1008, 15
      %s1011 = smul.addr %s1010, 4
      %s1012 = scalar_lea.vmem %s7, %s1011
      %s1013 = smul.u32 8, %s21
      %p1014 = scmp.lt.s32.totalorder %s1013, 15
      %s1015 = scalar_select %p1014, %s1013, 15
      %s1016 = smul.addr %s1015, 4
      %s1017 = scalar_lea.vmem %s8, %s1016
      %s1018 = smul.u32 8, %s21
      %p1019 = scmp.lt.s32.totalorder %s1018, 15
      %s1020 = scalar_select %p1019, %s1018, 15
      %s1021 = smul.addr %s1020, 4
      %s1022 = scalar_lea.vmem %s9, %s1021
      // Predicated region
      $region49: #{tpu_custom_call.1} parent=47 // pred_check
        %p1023 = pneg %p191
      $region50: #{tpu_custom_call.1} parent=47 // pred_check_branch
        %1025 = sbr.rel (%p1023) target = $region52
      $region51: #{tpu_custom_call.1} parent=47 // pred_region
        %s1026 = smul.u32 8, %s21
      $region52: #{tpu_custom_call.1} parent=47 // pred_fallthru
        _
      // Predicated region
      $region53: #{tpu_custom_call.1} parent=47 // pred_check
        %p1027 = pneg %p217
      $region54: #{tpu_custom_call.1} parent=47 // pred_check_branch
        %1029 = sbr.rel (%p1027) target = $region56
      $region55: #{tpu_custom_call.1} parent=47 // pred_region
        %s1030 = smul.u32 8, %s21
      $region56: #{tpu_custom_call.1} parent=47 // pred_fallthru
        _
      // Predicated region
      $region57: #{tpu_custom_call.1} parent=47 // pred_check
        %p1031 = pneg %p243
      $region58: #{tpu_custom_call.1} parent=47 // pred_check_branch
        %1033 = sbr.rel (%p1031) target = $region60
      $region59: #{tpu_custom_call.1} parent=47 // pred_region
        %s1034 = smul.u32 8, %s21
      $region60: #{tpu_custom_call.1} parent=47 // pred_fallthru
        _
    $region48: #{tpu_custom_call.1} parent=5 // pred_fallthru
      _
    %p1035 = scmp.le.s32.totalorder 2, %s16
    // Predicated region
    $region61: #{tpu_custom_call.1} parent=5 // pred_check
      %p1036 = pneg %p1035
    $region62: #{tpu_custom_call.1} parent=5 // pred_check_branch
      %1038 = sbr.rel (%p1036) target = $region64
    $region63: #{tpu_custom_call.1} parent=5 // pred_region
      %s1039 = ssub.s32 %s16, 2
      // Predicated region
      $region65: #{tpu_custom_call.1} parent=63 // pred_check
        %p1040 = pneg %p197
      $region66: #{tpu_custom_call.1} parent=63 // pred_check_branch
        %1042 = sbr.rel (%p1040) target = $region68
      $region67: #{tpu_custom_call.1} parent=63 // pred_region
        %s1043 = smul.u32 8, %s22
        %p1044 = scmp.lt.s32.totalorder %s1043, 15
        %s1045 = scalar_select %p1044, %s1043, 15
        %s1046 = smul.addr %s1045, 4
        %s1047 = scalar_lea.vmem %s7, %s1046
      $region68: #{tpu_custom_call.1} parent=63 // pred_fallthru
        _
      // Predicated region
      $region69: #{tpu_custom_call.1} parent=63 // pred_check
        %p1048 = pneg %p223
      $region70: #{tpu_custom_call.1} parent=63 // pred_check_branch
        %1050 = sbr.rel (%p1048) target = $region72
      $region71: #{tpu_custom_call.1} parent=63 // pred_region
        %s1051 = smul.u32 8, %s22
        %p1052 = scmp.lt.s32.totalorder %s1051, 15
        %s1053 = scalar_select %p1052, %s1051, 15
        %s1054 = smul.addr %s1053, 4
        %s1055 = scalar_lea.vmem %s8, %s1054
      $region72: #{tpu_custom_call.1} parent=63 // pred_fallthru
        _
      // Predicated region
      $region73: #{tpu_custom_call.1} parent=63 // pred_check
        %p1056 = pneg %p249
      $region74: #{tpu_custom_call.1} parent=63 // pred_check_branch
        %1058 = sbr.rel (%p1056) target = $region76
      $region75: #{tpu_custom_call.1} parent=63 // pred_region
        %s1059 = smul.u32 8, %s22
        %p1060 = scmp.lt.s32.totalorder %s1059, 15
        %s1061 = scalar_select %p1060, %s1059, 15
        %s1062 = smul.addr %s1061, 4
        %s1063 = scalar_lea.vmem %s9, %s1062
      $region76: #{tpu_custom_call.1} parent=63 // pred_fallthru
        _
    $region64: #{tpu_custom_call.1} parent=5 // pred_fallthru
      _
  $region6: #{tpu_custom_call.1} parent=0 // loop_footer
    %s20 = sadd.s32 1, %s16
  $region7: #{tpu_custom_call.1} parent=0 // loop_footer_branch
    %15 = sbr.rel target = $region3
  $region8: #{tpu_custom_call.1} parent=0 // loop_exit
    _

</llo_original>
